<compile_context>
chip_gen: v7x
topology: tpu7x:2x2x1
jax: 0.10.0
libtpu: 0.0.40
codegen_flags: <defaults>
</compile_context>

<pallas_src>
import functools

import jax
import jax.numpy as jnp
from jax.experimental import pallas as pl
from jax.experimental.pallas import tpu as pltpu


def _round_up(x, m):
    return (x + m - 1) // m * m


def _fused_mlp_kernel(x_ref, *refs, n_layers, chunk, n_chunks, compute_dtype):
    """Fused MLP forward on one natural-layout (TM, D) tile.

    refs = (wT_0, b_0, ..., wT_{L-1}, b_{L-1}, o_ref).  Weights/biases are tiny
    and VMEM-resident.  Output o_ref is lane-dense (O_last, TM).
    """
    o_ref = refs[-1]
    wb = refs[:-1]
    wts = [wb[2 * li][...] for li in range(n_layers)]        # (O_l, D_l)
    bs = [wb[2 * li + 1][...] for li in range(n_layers)]     # (O_l, 1) f32

    # Process the tile in lane-chunks so only a small slice of activations is
    # live at a time (bounds vreg pressure when TM is large).
    for c in range(n_chunks):
        lo = c * chunk
        xc = x_ref[lo:lo + chunk, :]                          # (chunk, D) natural
        # Layer 0: fold the (chunk, D) -> (D, chunk) transpose into the matmul
        # (contract dim 1 of both operands, the q @ k^T pattern), giving a
        # lane-dense (O_0, chunk) activation with M on the 128-lane axis.
        h = jax.lax.dot_general(
            wts[0], xc, (((1,), (1,)), ((), ())),
            preferred_element_type=jnp.float32) + bs[0]
        if n_layers > 1:
            h = jnp.tanh(h)                                   # f32 tanh (v5e-safe)
        for li in range(1, n_layers):
            h = jnp.dot(wts[li], h.astype(compute_dtype),
                        preferred_element_type=jnp.float32) + bs[li]
            if li < n_layers - 1:                             # identity on last
                h = jnp.tanh(h)
        o_ref[:, lo:lo + chunk] = h.astype(o_ref.dtype)       # lane-dense store


def _fused_forward(x2d, wts, bs, *, tm_max=2048, compute_dtype=jnp.float32):
    """x2d: (M, D) natural layout.  wts[l]: (O_l, D_l); bs[l]: (O_l, 1).

    Returns the lane-dense (O_last, M) result (caller transposes the small
    output)."""
    M, D = x2d.shape
    n_layers = len(wts)
    o_last = wts[-1].shape[0]

    if compute_dtype != jnp.float32:
        # bf16 I/O path: halves HBM bytes for the big input + MXU operands.
        x2d = x2d.astype(compute_dtype)
        wts = [w.astype(compute_dtype) for w in wts]
    bs = [b.astype(jnp.float32) for b in bs]                  # bias/tanh in f32

    # Tile selection: big lane-aligned tiles amortise the per-grid-step cost;
    # padding is decoupled from the tile (pl.cdiv grid + Pallas block masking,
    # no jnp.pad copy); keep >=2 grid steps when possible for v7x's 2 TCs.
    if M <= 128:
        tm = M                                                # single exact block
    else:
        m_lanes = _round_up(M, 128)
        tm = min(tm_max, m_lanes)
        if tm == m_lanes:                                     # would be 1 step
            tm = _round_up(pl.cdiv(m_lanes, 2), 128)
    num_tiles = pl.cdiv(M, tm)

    # In-kernel chunk width (lane dim of the compute): bounds vreg pressure.
    if tm % 256 == 0:
        chunk = 256
    elif tm % 128 == 0:
        chunk = 128
    else:
        chunk = tm
    n_chunks = tm // chunk

    in_specs = [pl.BlockSpec((tm, D), lambda i: (i, 0))]      # contiguous HBM read
    args = [x2d]
    for wT, b in zip(wts, bs):
        in_specs.append(pl.BlockSpec(wT.shape, lambda i: (0, 0)))  # VMEM-resident
        in_specs.append(pl.BlockSpec(b.shape, lambda i: (0, 0)))   # VMEM-resident
        args.append(wT)
        args.append(b)

    m_cov = num_tiles * tm
    flops = sum(2 * w.shape[0] * w.shape[1] * m_cov + w.shape[0] * m_cov
                for w in wts)
    transcendentals = sum(w.shape[0] * m_cov for w in wts[:-1])
    bytes_accessed = int(x2d.dtype.itemsize * x2d.size + 4 * o_last * M
                         + sum(w.size * w.dtype.itemsize + 4 * b.size
                               for w, b in zip(wts, bs)))

    kernel = functools.partial(_fused_mlp_kernel, n_layers=n_layers,
                               chunk=chunk, n_chunks=n_chunks,
                               compute_dtype=compute_dtype)
    return pl.pallas_call(
        kernel,
        out_shape=jax.ShapeDtypeStruct((o_last, M), jnp.float32),
        grid_spec=pl.GridSpec(
            grid=(num_tiles,),
            in_specs=in_specs,
            out_specs=pl.BlockSpec((o_last, tm), lambda i: (0, i)),  # lane-dense
        ),
        compiler_params=pltpu.CompilerParams(
            # TODO(synk): on v7x try pltpu.CORE_PARALLEL here (2 TensorCores).
            dimension_semantics=("parallel",),
        ),
        cost_estimate=pl.CostEstimate(flops=flops,
                                      transcendentals=transcendentals,
                                      bytes_accessed=bytes_accessed),
    )(*args)


def init_mean_field_bnn_params(dims, key):
    """Deterministic init mirroring nn.Parameter(torch.randn((d_in+1, d_out)) * 0.1)."""
    params = []
    for i in range(len(dims) - 1):
        key, sub = jax.random.split(key)
        w_full = jax.random.normal(sub, (dims[i] + 1, dims[i + 1]),
                                   dtype=jnp.float32) * 0.1
        params.append(w_full)
    return params


def mean_field_bnn_forward(x, params, num_samples=1, compute_dtype=jnp.float32):
    """Forward with variational=False: activation(x_aug @ w) per MeanFieldLayer."""
    while x.ndim < 3:
        x = x[None]
    S0, B, D = x.shape
    M = S0 * B

    # Split each (D_in+1, D_out) parameter into transposed weight + bias column.
    wts = [w_full[:-1, :].T for w_full in params]             # (O_l, D_l), tiny
    bs = [w_full[-1:, :].T for w_full in params]              # (O_l, 1), tiny

    x2d = x.reshape(M, D)                                     # no transpose copy
    out_t = _fused_forward(x2d, wts, bs, compute_dtype=compute_dtype)  # (O_last, M)
    out = out_t.T.reshape(S0, B, -1)                          # small output only

    if num_samples != 1:
        # Non-variational weights are identical per sample; replicate only the
        # output (skip entirely if downstream can broadcast the sample axis).
        out = jnp.tile(out, (num_samples, 1, 1))

    # TODO(synk): variational=True path (per-sample reparameterised weight
    # sampling) and KL/ELBO losses are training-only and not implemented here.
    return out


def _reference_forward(x, params, num_samples=1):
    while x.ndim < 3:
        x = x[None]
    x = jnp.tile(x, (num_samples, 1, 1))
    h = x
    n_layers = len(params)
    for li, w_full in enumerate(params):
        ones = jnp.ones(h.shape[:-1] + (1,), h.dtype)
        h_aug = jnp.concatenate([h, ones], axis=-1)
        h = jnp.einsum("sbi,io->sbo", h_aug, w_full)
        if li < n_layers - 1:
            h = jnp.tanh(h)
    return h


if __name__ == "__main__":
    dims = [16, 32, 32, 8]
    key = jax.random.PRNGKey(0)
    k_param, k_x, k_x2 = jax.random.split(key, 3)

    params = init_mean_field_bnn_params(dims, k_param)

    # Tiny case: x (num_samples_in=2, batch=8, input_dim=16) -> single block.
    x = jax.random.normal(k_x, (2, 8, 16), dtype=jnp.float32)
    out = jax.block_until_ready(mean_field_bnn_forward(x, params, num_samples=1))
    ref = _reference_forward(x, params, num_samples=1)
    assert out.shape == ref.shape == (2, 8, 8), out.shape
    assert jnp.allclose(out, ref, atol=1e-5, rtol=1e-5), "mismatch vs reference"

    # num_samples > 1: output tiled instead of replicating the input in HBM.
    out2 = jax.block_until_ready(mean_field_bnn_forward(x, params, num_samples=3))
    ref2 = _reference_forward(x, params, num_samples=3)
    assert out2.shape == ref2.shape == (6, 8, 8), out2.shape
    assert jnp.allclose(out2, ref2, atol=1e-5, rtol=1e-5), "mismatch (num_samples=3)"

    # Larger flattened batch: exercises a 2-step grid (two 256-row tiles).
    xl = jax.random.normal(k_x2, (4, 128, 16), dtype=jnp.float32)
    out3 = jax.block_until_ready(mean_field_bnn_forward(xl, params))
    ref3 = _reference_forward(xl, params)
    assert out3.shape == ref3.shape == (4, 128, 8), out3.shape
    assert jnp.allclose(out3, ref3, atol=1e-5, rtol=1e-5), "mismatch (multi-tile)"

    # Optional bf16 I/O path (halves HBM bytes on v6e/v7x); looser parity.
    out_bf16 = jax.block_until_ready(
        mean_field_bnn_forward(xl, params, compute_dtype=jnp.bfloat16))
    assert out_bf16.shape == ref3.shape
    assert jnp.allclose(out_bf16, ref3, atol=5e-2, rtol=5e-2), "bf16 path diverged"

    print("KERNEL_OK")
</pallas_src>

<mosaic_0001>
module attributes {stable_mosaic.version = 11 : i64} {
  func.func @_fused_mlp_kernel(%arg0: i32, %arg1: memref<16x16xf32, #tpu.memory_space<vmem>>, %arg2: memref<32x16xf32, #tpu.memory_space<vmem>>, %arg3: memref<32x1xf32, #tpu.memory_space<vmem>>, %arg4: memref<32x32xf32, #tpu.memory_space<vmem>>, %arg5: memref<32x1xf32, #tpu.memory_space<vmem>>, %arg6: memref<8x32xf32, #tpu.memory_space<vmem>>, %arg7: memref<8x1xf32, #tpu.memory_space<vmem>>, %arg8: memref<8x16xf32, #tpu.memory_space<vmem>>) attributes {dimension_semantics = [#tpu.dimension_semantics<parallel>], iteration_bounds = array<i64: 1>, scalar_prefetch = 0 : i64, scratch_operands = 0 : i64, tpu.core_type = #tpu.core_type<tc>, window_params = [{transform_indices = @transform_0, window_bounds = array<i64: 16, 16>}, {pipeline_mode = #tpu.pipeline_mode<synchronous>, transform_indices = @transform_1, window_bounds = array<i64: 32, 16>}, {pipeline_mode = #tpu.pipeline_mode<synchronous>, transform_indices = @transform_2, window_bounds = array<i64: 32, 1>}, {pipeline_mode = #tpu.pipeline_mode<synchronous>, transform_indices = @transform_3, window_bounds = array<i64: 32, 32>}, {pipeline_mode = #tpu.pipeline_mode<synchronous>, transform_indices = @transform_4, window_bounds = array<i64: 32, 1>}, {pipeline_mode = #tpu.pipeline_mode<synchronous>, transform_indices = @transform_5, window_bounds = array<i64: 8, 32>}, {pipeline_mode = #tpu.pipeline_mode<synchronous>, transform_indices = @transform_6, window_bounds = array<i64: 8, 1>}, {transform_indices = @transform_7, window_bounds = array<i64: 8, 16>}]} {
    %c0 = arith.constant 0 : index
    %c0_0 = arith.constant 0 : index
    %0 = vector.load %arg2[%c0, %c0_0] : memref<32x16xf32, #tpu.memory_space<vmem>>, vector<32x16xf32>
    %c0_1 = arith.constant 0 : index
    %c0_2 = arith.constant 0 : index
    %1 = vector.load %arg4[%c0_1, %c0_2] : memref<32x32xf32, #tpu.memory_space<vmem>>, vector<32x32xf32>
    %c0_3 = arith.constant 0 : index
    %c0_4 = arith.constant 0 : index
    %2 = vector.load %arg6[%c0_3, %c0_4] : memref<8x32xf32, #tpu.memory_space<vmem>>, vector<8x32xf32>
    %c0_5 = arith.constant 0 : index
    %c0_6 = arith.constant 0 : index
    %3 = vector.load %arg3[%c0_5, %c0_6] : memref<32x1xf32, #tpu.memory_space<vmem>>, vector<32x1xf32>
    %c0_7 = arith.constant 0 : index
    %c0_8 = arith.constant 0 : index
    %4 = vector.load %arg5[%c0_7, %c0_8] : memref<32x1xf32, #tpu.memory_space<vmem>>, vector<32x1xf32>
    %c0_9 = arith.constant 0 : index
    %c0_10 = arith.constant 0 : index
    %5 = vector.load %arg7[%c0_9, %c0_10] : memref<8x1xf32, #tpu.memory_space<vmem>>, vector<8x1xf32>
    %c0_11 = arith.constant 0 : index
    %c0_12 = arith.constant 0 : index
    %6 = vector.load %arg1[%c0_11, %c0_12] : memref<16x16xf32, #tpu.memory_space<vmem>>, vector<16x16xf32>
    %cst = arith.constant dense<0.000000e+00> : vector<32x16xf32>
    %7 = tpu.matmul %0, %6, %cst {dimension_numbers = #tpu.dot_dimension_numbers<[1], [1], [0], [0], [0, 0, 1, 0], [], []>} : vector<32x16xf32>, vector<16x16xf32>, vector<32x16xf32> -> vector<32x16xf32>
    %8 = vector.broadcast %3 : vector<32x1xf32> to vector<32x16xf32>
    %9 = arith.addf %7, %8 : vector<32x16xf32>
    %10 = math.tanh %9 : vector<32x16xf32>
    %cst_13 = arith.constant dense<0.000000e+00> : vector<32x16xf32>
    %11 = tpu.matmul %1, %10, %cst_13 {dimension_numbers = #tpu.dot_dimension_numbers<[1], [0], [0], [1], [0, 0, 1, 1], [], []>} : vector<32x32xf32>, vector<32x16xf32>, vector<32x16xf32> -> vector<32x16xf32>
    %12 = vector.broadcast %4 : vector<32x1xf32> to vector<32x16xf32>
    %13 = arith.addf %11, %12 : vector<32x16xf32>
    %14 = math.tanh %13 : vector<32x16xf32>
    %cst_14 = arith.constant dense<0.000000e+00> : vector<8x16xf32>
    %15 = tpu.matmul %2, %14, %cst_14 {dimension_numbers = #tpu.dot_dimension_numbers<[1], [0], [0], [1], [0, 0, 1, 1], [], []>} : vector<8x32xf32>, vector<32x16xf32>, vector<8x16xf32> -> vector<8x16xf32>
    %16 = vector.broadcast %5 : vector<8x1xf32> to vector<8x16xf32>
    %17 = arith.addf %15, %16 : vector<8x16xf32>
    %c0_15 = arith.constant 0 : index
    %c0_16 = arith.constant 0 : index
    %18 = vector.load %arg8[%c0_15, %c0_16] : memref<8x16xf32, #tpu.memory_space<vmem>>, vector<8x16xf32>
    tpu.vector_store %arg8[%c0_15, %c0_16], %17 {strides = array<i32>} : memref<8x16xf32, #tpu.memory_space<vmem>>, vector<8x16xf32>,
    return
  }
  func.func @transform_0(%arg0: i32) -> (i32, i32) {
    %c0_i32 = arith.constant 0 : i32
    %c0_i32_0 = arith.constant 0 : i32
    return %arg0, %c0_i32 : i32, i32
  }
  func.func @transform_1(%arg0: i32) -> (i32, i32) {
    %c0_i32 = arith.constant 0 : i32
    %c0_i32_0 = arith.constant 0 : i32
    %c0_i32_1 = arith.constant 0 : i32
    return %c0_i32, %c0_i32_0 : i32, i32
  }
  func.func @transform_2(%arg0: i32) -> (i32, i32) {
    %c0_i32 = arith.constant 0 : i32
    %c0_i32_0 = arith.constant 0 : i32
    %c0_i32_1 = arith.constant 0 : i32
    return %c0_i32, %c0_i32_0 : i32, i32
  }
  func.func @transform_3(%arg0: i32) -> (i32, i32) {
    %c0_i32 = arith.constant 0 : i32
    %c0_i32_0 = arith.constant 0 : i32
    %c0_i32_1 = arith.constant 0 : i32
    return %c0_i32, %c0_i32_0 : i32, i32
  }
  func.func @transform_4(%arg0: i32) -> (i32, i32) {
    %c0_i32 = arith.constant 0 : i32
    %c0_i32_0 = arith.constant 0 : i32
    %c0_i32_1 = arith.constant 0 : i32
    return %c0_i32, %c0_i32_0 : i32, i32
  }
  func.func @transform_5(%arg0: i32) -> (i32, i32) {
    %c0_i32 = arith.constant 0 : i32
    %c0_i32_0 = arith.constant 0 : i32
    %c0_i32_1 = arith.constant 0 : i32
    return %c0_i32, %c0_i32_0 : i32, i32
  }
  func.func @transform_6(%arg0: i32) -> (i32, i32) {
    %c0_i32 = arith.constant 0 : i32
    %c0_i32_0 = arith.constant 0 : i32
    %c0_i32_1 = arith.constant 0 : i32
    return %c0_i32, %c0_i32_0 : i32, i32
  }
  func.func @transform_7(%arg0: i32) -> (i32, i32) {
    %c0_i32 = arith.constant 0 : i32
    %c0_i32_0 = arith.constant 0 : i32
    return %c0_i32, %arg0 : i32, i32
  }
}

</mosaic_0001>

<llo_original>
// kernel: tpu_custom_call.1
$region0: #{tpu_custom_call.1}
  #allocation0 [shape = 'u32[]', space=smem, size = 0x4, offset = 0x4, fixed_abs, tag = 'smem constant byte address 0x4 - core index']
  #allocation1 [shape = 'u32[144,128]{1,0:T(1,128)}', space=vmem, size = 0x12000, scoped, tag = 'internal scratch']
  %s0 = inlined_call_operand.vmem [shape: f32[16,16], index: 0, kind: input, shape index: {}]
  %s1 = inlined_call_operand.vmem [shape: f32[32,16], index: 1, kind: input, shape index: {}]
  %s2 = inlined_call_operand.vmem [shape: f32[32,1], index: 2, kind: input, shape index: {}]
  %s3 = inlined_call_operand.vmem [shape: f32[32,32], index: 3, kind: input, shape index: {}]
  %s4 = inlined_call_operand.vmem [shape: f32[32,1], index: 4, kind: input, shape index: {}]
  %s5 = inlined_call_operand.vmem [shape: f32[8,32], index: 5, kind: input, shape index: {}]
  %s6 = inlined_call_operand.vmem [shape: f32[8,1], index: 6, kind: input, shape index: {}]
  %s7 = inlined_call_operand.hbm [shape: f32[8,16], index: 7, kind: output, shape index: {}]
  %s8 = sld [smem:[#allocation0]]
  $region38: #{tpu_custom_call.1} parent=0
    _
  %s10 = ssub.s32 1, %s8
  %s11 = scalar_select 0, %s10, %s8
  $region1: #{tpu_custom_call.1} parent=0
    #allocation2 [shape = 'u8[4096]{0}', space=vmem, size = 0x1000, scoped, tag = 'output window, operand 0, single buffered']
    #allocation3 [shape = 's32[1]{0}', space=sflag, size = 0x4, scoped, tag = 'scoped memory for tpu_custom_call.1']
    %12 = vsyncpa [#allocation3], 0
    // Predicated region
    $region2: #{tpu_custom_call.1} parent=1 // pred_check
      _
    $region3: #{tpu_custom_call.1} parent=1 // pred_check_branch
      %14 = sbr.rel (0) target = $region5
    $region4: #{tpu_custom_call.1} parent=1 // pred_region
      _
    $region5: #{tpu_custom_call.1} parent=1 // pred_fallthru
      _
    // Predicated region
    $region6: #{tpu_custom_call.1} parent=1 // pred_check
      _
    $region7: #{tpu_custom_call.1} parent=1 // pred_check_branch
      %16 = sbr.rel (0) target = $region9
    $region8: #{tpu_custom_call.1} parent=1 // pred_region
      _
    $region9: #{tpu_custom_call.1} parent=1 // pred_fallthru
      _
    // Predicated region
    $region10: #{tpu_custom_call.1} parent=1 // pred_check
      _
    $region11: #{tpu_custom_call.1} parent=1 // pred_check_branch
      %18 = sbr.rel (0) target = $region13
    $region12: #{tpu_custom_call.1} parent=1 // pred_region
      _
    $region13: #{tpu_custom_call.1} parent=1 // pred_fallthru
      _
    // Predicated region
    $region14: #{tpu_custom_call.1} parent=1 // pred_check
      _
    $region15: #{tpu_custom_call.1} parent=1 // pred_check_branch
      %20 = sbr.rel (0) target = $region17
    $region16: #{tpu_custom_call.1} parent=1 // pred_region
      _
    $region17: #{tpu_custom_call.1} parent=1 // pred_fallthru
      _
    // Predicated region
    $region18: #{tpu_custom_call.1} parent=1 // pred_check
      _
    $region19: #{tpu_custom_call.1} parent=1 // pred_check_branch
      %22 = sbr.rel (0) target = $region21
    $region20: #{tpu_custom_call.1} parent=1 // pred_region
      _
    $region21: #{tpu_custom_call.1} parent=1 // pred_fallthru
      _
    // Predicated region
    $region22: #{tpu_custom_call.1} parent=1 // pred_check
      _
    $region23: #{tpu_custom_call.1} parent=1 // pred_check_branch
      %24 = sbr.rel (0) target = $region25
    $region24: #{tpu_custom_call.1} parent=1 // pred_region
      _
    $region25: #{tpu_custom_call.1} parent=1 // pred_fallthru
      _
    // Predicated region
    $region26: #{tpu_custom_call.1} parent=1 // pred_check
      _
    $region27: #{tpu_custom_call.1} parent=1 // pred_check_branch
      %26 = sbr.rel (0) target = $region29
    $region28: #{tpu_custom_call.1} parent=1 // pred_region
      _
    $region29: #{tpu_custom_call.1} parent=1 // pred_fallthru
      _
    %v27 = vld [vmem:[%s1] sm:$0xff]
    %v28 = vld [vmem:[%s1 + $0x8] sm:$0xff]
    %v29 = vld [vmem:[%s1 + $0x10] sm:$0xff]
    %v30 = vld [vmem:[%s1 + $0x18] sm:$0xff]
    %v31 = vld [vmem:[%s3] sm:$0xff]
    %v32 = vld [vmem:[%s3 + $0x8] sm:$0xff]
    %v33 = vld [vmem:[%s3 + $0x10] sm:$0xff]
    %v34 = vld [vmem:[%s3 + $0x18] sm:$0xff]
    %v35 = vld [vmem:[%s5] sm:$0xff]
    %v36 = vld [vmem:[%s2] sm:$0xff]
    %v37 = vld [vmem:[%s2 + $0x8] sm:$0xff]
    %v38 = vld [vmem:[%s2 + $0x10] sm:$0xff]
    %v39 = vld [vmem:[%s2 + $0x18] sm:$0xff]
    %v40 = vld [vmem:[%s4] sm:$0xff]
    %v41 = vld [vmem:[%s4 + $0x8] sm:$0xff]
    %v42 = vld [vmem:[%s4 + $0x10] sm:$0xff]
    %v43 = vld [vmem:[%s4 + $0x18] sm:$0xff]
    %v44 = vld [vmem:[%s6] sm:$0xff]
    %v45 = vld [vmem:[%s0] sm:$0xff]
    %v46 = vld [vmem:[%s0 + $0x8] sm:$0xff]
    %48 = vset.pattern.permute.xlu0 0
    %49 = vperm.xlu0 %48, %v36
    %v50 = vpop.permute.xlu0 %49
    %53 = vset.pattern.permute.xlu0 0
    %54 = vperm.xlu0 %53, %v37
    %v55 = vpop.permute.xlu0 %54
    %58 = vset.pattern.permute.xlu0 0
    %59 = vperm.xlu0 %58, %v38
    %v60 = vpop.permute.xlu0 %59
    %63 = vset.pattern.permute.xlu0 0
    %64 = vperm.xlu0 %63, %v39
    %v65 = vpop.permute.xlu0 %64
    %vm67 = vcmask 130048
    %v69 = vsel %vm67, %v27, 0
    %v72 = vsel %vm67, %v28, 0
    %v75 = vsel %vm67, %v29, 0
    %v78 = vsel %vm67, %v30, 0
    %v81 = vsel %vm67, %v45, 0
    %v84 = vsel %vm67, %v46, 0
    %86 = vmatprep.subr.mxu0 0.0
    %87 = vmatpush1.xpose.msra.mxu0 %v81
    %88 = vmatprep.subr.mxu0 0.0
    %89 = vmatpush1.xpose.msra.mxu0 %v84
    %90 = vmatprep.subr.mxu0 0.0
    %91 = vmatpush1.xpose.msra.mxu0 0.0
    %92 = vmatprep.subr.mxu0 0.0
    %93 = vmatpush1.xpose.msra.mxu0 0.0
    %94 = vmatprep.subr.mxu0 0.0
    %95 = vmatpush1.xpose.msra.mxu0 0.0
    %96 = vmatprep.subr.mxu0 0.0
    %97 = vmatpush1.xpose.msra.mxu0 0.0
    %98 = vmatprep.subr.mxu0 0.0
    %99 = vmatpush1.xpose.msra.mxu0 0.0
    %100 = vmatprep.subr.mxu0 0.0
    %101 = vmatpush1.xpose.msra.mxu0 0.0
    %102 = vmatprep.subr.mxu0 0.0
    %103 = vmatpush1.xpose.msra.mxu0 0.0
    %104 = vmatprep.subr.mxu0 0.0
    %105 = vmatpush1.xpose.msra.mxu0 0.0
    %106 = vmatprep.subr.mxu0 0.0
    %107 = vmatpush1.xpose.msra.mxu0 0.0
    %108 = vmatprep.subr.mxu0 0.0
    %109 = vmatpush1.xpose.msra.mxu0 0.0
    %110 = vmatprep.subr.mxu0 0.0
    %111 = vmatpush1.xpose.msra.mxu0 0.0
    %112 = vmatprep.subr.mxu0 0.0
    %113 = vmatpush1.xpose.msra.mxu0 0.0
    %114 = vmatprep.subr.mxu0 0.0
    %115 = vmatpush1.xpose.msra.mxu0 0.0
    %116 = vmatprep.subr.mxu0 0.0
    %117 = vmatpush1.xpose.msra.mxu0 0.0
    %118 = vmatprep.subr.mxu0 0.0
    %119 = vmatpush1.xpose.msra.mxu0 0.0
    %120 = vmatprep.subr.mxu0 0.0
    %121 = vmatpush1.xpose.msra.mxu0 0.0
    %122 = vmatprep.subr.mxu0 0.0
    %123 = vmatpush1.xpose.msra.mxu0 0.0
    %124 = vmatprep.subr.mxu0 0.0
    %125 = vmatpush1.xpose.msra.mxu0 0.0
    %126 = vmatprep.subr.mxu0 0.0
    %127 = vmatpush1.xpose.msra.mxu0 0.0
    %128 = vmatprep.subr.mxu0 0.0
    %129 = vmatpush1.xpose.msra.mxu0 0.0
    %130 = vmatprep.subr.mxu0 0.0
    %131 = vmatpush1.xpose.msra.mxu0 0.0
    %132 = vmatprep.subr.mxu0 0.0
    %133 = vmatpush1.xpose.msra.mxu0 0.0
    %134 = vmatprep.subr.mxu0 0.0
    %135 = vmatpush1.xpose.msra.mxu0 0.0
    %136 = vmatprep.subr.mxu0 0.0
    %137 = vmatpush1.xpose.msra.mxu0 0.0
    %138 = vmatprep.subr.mxu0 0.0
    %139 = vmatpush1.xpose.msra.mxu0 0.0
    %140 = vmatprep.subr.mxu0 0.0
    %141 = vmatpush1.xpose.msra.mxu0 0.0
    %142 = vmatprep.subr.mxu0 0.0
    %143 = vmatpush1.xpose.msra.mxu0 0.0
    %144 = vmatprep.subr.mxu0 0.0
    %145 = vmatpush1.xpose.msra.mxu0 0.0
    %146 = vmatprep.subr.mxu0 0.0
    %147 = vmatpush1.xpose.msra.mxu0 0.0
    %148 = vmatprep.subr.mxu0 0.0
    %149 = vmatpush1.xpose.msra.mxu0 0.0
    %150 = vmatprep.mubr.f32.mxu0 0.0
    %151 = vmatmul.mubr.f32.gmra.mrb[0].mxu0 %v69
    %v152 = vpop.f32.mrb[0].mxu0
    %v153 = vadd.f32 %v50, %v152
    %v154 = vpop.f32.mrb[0].mxu0
    %155 = vmatprep.mubr.f32.mxu0 0.0
    %156 = vmatmul.mubr.f32.gmra.mrb[0].mxu0 %v72
    %v157 = vpop.f32.mrb[0].mxu0
    %v158 = vadd.f32 %v55, %v157
    %v159 = vpop.f32.mrb[0].mxu0
    %160 = vmatprep.mubr.f32.mxu0 0.0
    %161 = vmatmul.mubr.f32.gmra.mrb[0].mxu0 %v75
    %v162 = vpop.f32.mrb[0].mxu0
    %v163 = vadd.f32 %v60, %v162
    %v164 = vpop.f32.mrb[0].mxu0
    %165 = vmatprep.mubr.f32.mxu0 0.0
    %166 = vmatmul.mubr.f32.gmra.mrb[0].mxu0 %v78
    %v167 = vpop.f32.mrb[0].mxu0
    %v168 = vadd.f32 %v65, %v167
    %v169 = vpop.f32.mrb[0].mxu0
    %170 = vdwg.mxu0
    %v171 = vtanh.pop %v153
    %v172 = vtanh.pop %v158
    %v173 = vtanh.pop %v163
    %v174 = vtanh.pop %v168
    %176 = vset.pattern.permute.xlu0 0
    %177 = vperm.xlu0 %176, %v40
    %v178 = vpop.permute.xlu0 %177
    %181 = vset.pattern.permute.xlu0 0
    %182 = vperm.xlu0 %181, %v41
    %v183 = vpop.permute.xlu0 %182
    %186 = vset.pattern.permute.xlu0 0
    %187 = vperm.xlu0 %186, %v42
    %v188 = vpop.permute.xlu0 %187
    %191 = vset.pattern.permute.xlu0 0
    %192 = vperm.xlu0 %191, %v43
    %v193 = vpop.permute.xlu0 %192
    %vm195 = vcmask 261120
    %v197 = vsel %vm195, %v31, 0
    %v200 = vsel %vm195, %v32, 0
    %v203 = vsel %vm195, %v33, 0
    %v206 = vsel %vm195, %v34, 0
    %208 = vmatprep.subr.mxu0 0.0
    %209 = vmatpush1.msra.mxu0 %v171
    %210 = vmatprep.subr.mxu0 0.0
    %211 = vmatpush1.msra.mxu0 %v172
    %212 = vmatprep.subr.mxu0 0.0
    %213 = vmatpush1.msra.mxu0 %v173
    %214 = vmatprep.subr.mxu0 0.0
    %215 = vmatpush1.msra.mxu0 %v174
    %216 = vmatprep.subr.mxu0 0.0
    %217 = vmatpush1.msra.mxu0 0.0
    %218 = vmatprep.subr.mxu0 0.0
    %219 = vmatpush1.msra.mxu0 0.0
    %220 = vmatprep.subr.mxu0 0.0
    %221 = vmatpush1.msra.mxu0 0.0
    %222 = vmatprep.subr.mxu0 0.0
    %223 = vmatpush1.msra.mxu0 0.0
    %224 = vmatprep.subr.mxu0 0.0
    %225 = vmatpush1.msra.mxu0 0.0
    %226 = vmatprep.subr.mxu0 0.0
    %227 = vmatpush1.msra.mxu0 0.0
    %228 = vmatprep.subr.mxu0 0.0
    %229 = vmatpush1.msra.mxu0 0.0
    %230 = vmatprep.subr.mxu0 0.0
    %231 = vmatpush1.msra.mxu0 0.0
    %232 = vmatprep.subr.mxu0 0.0
    %233 = vmatpush1.msra.mxu0 0.0
    %234 = vmatprep.subr.mxu0 0.0
    %235 = vmatpush1.msra.mxu0 0.0
    %236 = vmatprep.subr.mxu0 0.0
    %237 = vmatpush1.msra.mxu0 0.0
    %238 = vmatprep.subr.mxu0 0.0
    %239 = vmatpush1.msra.mxu0 0.0
    %240 = vmatprep.subr.mxu0 0.0
    %241 = vmatpush1.msra.mxu0 0.0
    %242 = vmatprep.subr.mxu0 0.0
    %243 = vmatpush1.msra.mxu0 0.0
    %244 = vmatprep.subr.mxu0 0.0
    %245 = vmatpush1.msra.mxu0 0.0
    %246 = vmatprep.subr.mxu0 0.0
    %247 = vmatpush1.msra.mxu0 0.0
    %248 = vmatprep.subr.mxu0 0.0
    %249 = vmatpush1.msra.mxu0 0.0
    %250 = vmatprep.subr.mxu0 0.0
    %251 = vmatpush1.msra.mxu0 0.0
    %252 = vmatprep.subr.mxu0 0.0
    %253 = vmatpush1.msra.mxu0 0.0
    %254 = vmatprep.subr.mxu0 0.0
    %255 = vmatpush1.msra.mxu0 0.0
    %256 = vmatprep.subr.mxu0 0.0
    %257 = vmatpush1.msra.mxu0 0.0
    %258 = vmatprep.subr.mxu0 0.0
    %259 = vmatpush1.msra.mxu0 0.0
    %260 = vmatprep.subr.mxu0 0.0
    %261 = vmatpush1.msra.mxu0 0.0
    %262 = vmatprep.subr.mxu0 0.0
    %263 = vmatpush1.msra.mxu0 0.0
    %264 = vmatprep.subr.mxu0 0.0
    %265 = vmatpush1.msra.mxu0 0.0
    %266 = vmatprep.subr.mxu0 0.0
    %267 = vmatpush1.msra.mxu0 0.0
    %268 = vmatprep.subr.mxu0 0.0
    %269 = vmatpush1.msra.mxu0 0.0
    %270 = vmatprep.subr.mxu0 0.0
    %271 = vmatpush1.msra.mxu0 0.0
    %272 = vmatprep.mubr.f32.mxu0 0.0
    %273 = vmatmul.mubr.f32.gmra.mrb[0].mxu0 %v197
    %v274 = vpop.f32.mrb[0].mxu0
    %v275 = vadd.f32 %v178, %v274
    %v276 = vpop.f32.mrb[0].mxu0
    %277 = vmatprep.mubr.f32.mxu0 0.0
    %278 = vmatmul.mubr.f32.gmra.mrb[0].mxu0 %v200
    %v279 = vpop.f32.mrb[0].mxu0
    %v280 = vadd.f32 %v183, %v279
    %v281 = vpop.f32.mrb[0].mxu0
    %282 = vmatprep.mubr.f32.mxu0 0.0
    %283 = vmatmul.mubr.f32.gmra.mrb[0].mxu0 %v203
    %v284 = vpop.f32.mrb[0].mxu0
    %v285 = vadd.f32 %v188, %v284
    %v286 = vpop.f32.mrb[0].mxu0
    %287 = vmatprep.mubr.f32.mxu0 0.0
    %288 = vmatmul.mubr.f32.gmra.mrb[0].mxu0 %v206
    %v289 = vpop.f32.mrb[0].mxu0
    %v290 = vadd.f32 %v193, %v289
    %v291 = vpop.f32.mrb[0].mxu0
    %292 = vdwg.mxu0
    %v293 = vtanh.pop %v275
    %v294 = vtanh.pop %v280
    %v295 = vtanh.pop %v285
    %v296 = vtanh.pop %v290
    %298 = vset.pattern.permute.xlu0 0
    %299 = vperm.xlu0 %298, %v44
    %v300 = vpop.permute.xlu0 %299
    %v303 = vsel %vm195, %v35, 0
    %305 = vmatprep.subr.mxu0 0.0
    %306 = vmatpush1.msra.mxu0 %v293
    %307 = vmatprep.subr.mxu0 0.0
    %308 = vmatpush1.msra.mxu0 %v294
    %309 = vmatprep.subr.mxu0 0.0
    %310 = vmatpush1.msra.mxu0 %v295
    %311 = vmatprep.subr.mxu0 0.0
    %312 = vmatpush1.msra.mxu0 %v296
    %313 = vmatprep.subr.mxu0 0.0
    %314 = vmatpush1.msra.mxu0 0.0
    %315 = vmatprep.subr.mxu0 0.0
    %316 = vmatpush1.msra.mxu0 0.0
    %317 = vmatprep.subr.mxu0 0.0
    %318 = vmatpush1.msra.mxu0 0.0
    %319 = vmatprep.subr.mxu0 0.0
    %320 = vmatpush1.msra.mxu0 0.0
    %321 = vmatprep.subr.mxu0 0.0
    %322 = vmatpush1.msra.mxu0 0.0
    %323 = vmatprep.subr.mxu0 0.0
    %324 = vmatpush1.msra.mxu0 0.0
    %325 = vmatprep.subr.mxu0 0.0
    %326 = vmatpush1.msra.mxu0 0.0
    %327 = vmatprep.subr.mxu0 0.0
    %328 = vmatpush1.msra.mxu0 0.0
    %329 = vmatprep.subr.mxu0 0.0
    %330 = vmatpush1.msra.mxu0 0.0
    %331 = vmatprep.subr.mxu0 0.0
    %332 = vmatpush1.msra.mxu0 0.0
    %333 = vmatprep.subr.mxu0 0.0
    %334 = vmatpush1.msra.mxu0 0.0
    %335 = vmatprep.subr.mxu0 0.0
    %336 = vmatpush1.msra.mxu0 0.0
    %337 = vmatprep.subr.mxu0 0.0
    %338 = vmatpush1.msra.mxu0 0.0
    %339 = vmatprep.subr.mxu0 0.0
    %340 = vmatpush1.msra.mxu0 0.0
    %341 = vmatprep.subr.mxu0 0.0
    %342 = vmatpush1.msra.mxu0 0.0
    %343 = vmatprep.subr.mxu0 0.0
    %344 = vmatpush1.msra.mxu0 0.0
    %345 = vmatprep.subr.mxu0 0.0
    %346 = vmatpush1.msra.mxu0 0.0
    %347 = vmatprep.subr.mxu0 0.0
    %348 = vmatpush1.msra.mxu0 0.0
    %349 = vmatprep.subr.mxu0 0.0
    %350 = vmatpush1.msra.mxu0 0.0
    %351 = vmatprep.subr.mxu0 0.0
    %352 = vmatpush1.msra.mxu0 0.0
    %353 = vmatprep.subr.mxu0 0.0
    %354 = vmatpush1.msra.mxu0 0.0
    %355 = vmatprep.subr.mxu0 0.0
    %356 = vmatpush1.msra.mxu0 0.0
    %357 = vmatprep.subr.mxu0 0.0
    %358 = vmatpush1.msra.mxu0 0.0
    %359 = vmatprep.subr.mxu0 0.0
    %360 = vmatpush1.msra.mxu0 0.0
    %361 = vmatprep.subr.mxu0 0.0
    %362 = vmatpush1.msra.mxu0 0.0
    %363 = vmatprep.subr.mxu0 0.0
    %364 = vmatpush1.msra.mxu0 0.0
    %365 = vmatprep.subr.mxu0 0.0
    %366 = vmatpush1.msra.mxu0 0.0
    %367 = vmatprep.subr.mxu0 0.0
    %368 = vmatpush1.msra.mxu0 0.0
    %369 = vmatprep.mubr.f32.mxu0 0.0
    %370 = vmatmul.mubr.f32.gmra.mrb[0].mxu0 %v303
    %v371 = vpop.f32.mrb[0].mxu0
    %v372 = vadd.f32 %v300, %v371
    %v373 = vpop.f32.mrb[0].mxu0
    %374 = vdwg.mxu0
    %375 = vst.msk [vmem:[#allocation2] sm:$0xff] %vm67, %v372
    // Predicated region
    $region30: #{tpu_custom_call.1} parent=1 // pred_check
      _
    $region31: #{tpu_custom_call.1} parent=1 // pred_check_branch
      %377 = sbr.rel (0) target = $region33
    $region32: #{tpu_custom_call.1} parent=1 // pred_region
      %s379 = ssub.s32 128, 128
      %380 = vsyncadd [#allocation3], %s379
      %s382 = sshll.u32 [#allocation2], 4
      %s383 = int_to_ptr.vmem [resolvable:$true] %s382
      %385 = dma.vmem_to_hbm [thread:$0]  %s383, 128, %s7, [#allocation3]
    $region33: #{tpu_custom_call.1} parent=1 // pred_fallthru
      _
    // Predicated region
    $region34: #{tpu_custom_call.1} parent=1 // pred_check
      _
    $region35: #{tpu_custom_call.1} parent=1 // pred_check_branch
      %387 = sbr.rel (0) target = $region37
    $region36: #{tpu_custom_call.1} parent=1 // pred_region
      %388 = dma.done [#allocation3], 128
    $region37: #{tpu_custom_call.1} parent=1 // pred_fallthru
      _
    %389 = vsyncpa [#allocation3], 1

</llo_original>
